<compile_context>
chip_gen: v6e
topology: v6e:2x2x1
jax: 0.10.0
libtpu: 0.0.40
codegen_flags: <defaults>
</compile_context>

<pallas_src>
import numpy as np
import jax
import jax.numpy as jnp
from jax.experimental import pallas as pl
from jax.experimental.pallas import tpu as pltpu


# ----------------------------------------------------------------------------
# Deterministic parameter construction (same math as the module's `mel()`).
# ----------------------------------------------------------------------------

# Hard-coded mel frequency points, copied verbatim from the module.
_MEL_F = np.array([
    200, 200.65839880255413, 201.37750848432012, 201.51126380583162,
    201.67386956899037, 201.87582543688856, 202.13345527203808,
    202.47362290912503, 202.94395795945513, 203.63802229847101,
    204.7696777583669, 206.9686321525935, 212.88885671471746,
    217.43048869703566, 217.67573891228102, 217.99718059148606,
    218.43718046012455, 219.07709875345563, 220.09657180388132,
    221.99293137020203, 226.94388589196586, 232.62734674169212,
    235.10231672457329, 236.44419592188694, 239.27104445621455,
    247.84189145158842, 258.1332636574189, 266.45592538764413,
    287.9890352180489, 310.53399991020956, 329.7280481648527,
    365.2636543430171, 412.1971069913186, 474.9992071267056,
    543.8012938633804, 613.9981630065175, 684.4309008264818,
    746.926859193976, 824.9481206944652, 934.1647408605522,
    1059.406578152521, 1191.4714986828917, 1315.3661976656404,
    1417.0854269491579, 1511.4688454929535, 1612.80056993873,
    1721.6428871330952, 1838.288761545141, 1955.3394189452179,
    2064.968083010285, 2166.8084495171515, 2260.0916983488605,
    2338.3314875237083, 2401.906399148228, 2463.7128966413247,
    2524.8571234176743, 2580.0580920624607, 2628.9702036006215,
    2682.628540587129, 2735.574322816629, 2782.2949980039793,
    2823.2077006567883, 2863.515614399661, 2908.3053773334987,
    2947.9254283746377, 2987.2898160362897, 3026.660057289936,
    3066.3058926403455, 3110.9589651232495, 3150.8433299423505,
    3190.7647125250114, 3235.4147868690166, 3275.3314141881165,
    3315.610520650735, 3360.6813727382987, 3400.707128832307,
    3440.631288594453, 3485.2582072693517, 3525.048226029132,
    3565.061232929195, 3610.3530117659466, 3656.158234266066,
    3702.626404589744, 3749.713173618707, 3797.136734159918,
    3844.688148985763, 3892.179804142279, 3939.684061309631,
    3992.7908662105892, 4046.0964639926615, 4094.048026768339,
    4147.715225077025, 4201.803328840861, 4250.415130590165,
    4304.400570488394, 4358.891311144112, 4413.626381238448,
    4468.247903671312, 4523.200949785816, 4584.385109100807,
    4646.338108408218, 4708.794686519528, 4771.600484347028,
    4834.854981582876, 4904.5553996394865, 4974.441512229322,
    5045.491312421904, 5130.717507368683, 5223.421347621407,
    5317.079138212701, 5418.7071099135665, 5535.597836296701,
    5667.909048600521, 5808.1872217746295, 5956.457881201861,
    6127.4753815696895, 6314.274205611619, 6509.692128073985,
    6736.107119503475, 7008.663641495503, 7312.530456313335,
    7655.887319816534, 8100.341736238419, 8973.536714095795,
    10144.613928413162, 11315.69114273053, 12486.768357047898,
    13657.845571365266, 14828.922785682633, 16000,
], dtype=np.float64)


def custom_mel_filterbank(sr, n_fft, n_mels, norm=1):
    """Numpy re-implementation of the module's `mel()` (custom mel_f points)."""
    n_bins = 1 + n_fft // 2
    weights = np.zeros((n_mels, n_bins), dtype=np.float64)
    # librosa.fft_frequencies(sr, n_fft) == linspace(0, sr/2, 1 + n_fft//2)
    fftfreqs = np.linspace(0.0, float(sr) / 2.0, n_bins, endpoint=True)
    mel_f = _MEL_F
    fdiff = np.diff(mel_f)
    ramps = np.subtract.outer(mel_f, fftfreqs)
    for i in range(n_mels):
        lower = -ramps[i] / fdiff[i]
        upper = ramps[i + 2] / fdiff[i + 1]
        weights[i] = np.maximum(0.0, np.minimum(lower, upper))
    if norm == 1:
        enorm = 2.0 / (mel_f[2:n_mels + 2] - mel_f[:n_mels])
        weights *= enorm[:, np.newaxis]
    return weights  # (n_mels, n_bins)


# ----------------------------------------------------------------------------
# Pallas kernel: per-row-tile mel matmul + log compression (no global clamp --
# the top_db clamp is applied in the wrapper so tiles stay independent).
# ----------------------------------------------------------------------------

_DB_SCALE = float(10.0 / np.log(10.0))  # 10*log10(x) == ln(x) * 10/ln(10)


def _make_logmel_kernel(is_log, amin, ref):
    db_offset = float(10.0 * np.log10(np.maximum(amin, ref)))
    amin_f = float(amin)

    def kernel(x_ref, w_ref, o_ref):
        # (TILE_R, K) @ (K, n_mels) -> (TILE_R, n_mels) on the MXU.
        mel = jnp.dot(x_ref[...], w_ref[...], preferred_element_type=jnp.float32)
        if not is_log:
            o_ref[...] = mel
            return
        clamped = jnp.maximum(mel, jnp.float32(amin_f))
        # Fused: 10*log10(clamped) - db_offset  ==  ln(clamped)*C - db_offset.
        o_ref[...] = jnp.log(clamped) * jnp.float32(_DB_SCALE) - jnp.float32(db_offset)

    return kernel


def _round_up(n, m):
    return ((n + m - 1) // m) * m


def logmel_filterbank(x, melW, *, is_log=True, ref=1.0, amin=1e-10, top_db=80.0,
                      tile_rows=1024):
    """x: (..., n_bins) float32 power spectrogram; melW: (n_bins, n_mels)."""
    orig_shape = x.shape
    n_bins = orig_shape[-1]
    n_mels = melW.shape[1]
    rows = int(np.prod(orig_shape[:-1]))

    x2d = x.reshape(rows, n_bins).astype(jnp.float32)
    w = melW.astype(jnp.float32)

    # Row tile: multiple of 8 sublanes; never larger than needed for the input.
    # No explicit padding of x -- Pallas masks the ragged last row block, and
    # the K block equals the full array dim (exempt from 128-divisibility),
    # so no extra HBM copy of x is ever materialized.
    tile_r = min(_round_up(int(tile_rows), 8), _round_up(rows, 8))
    grid = (pl.cdiv(rows, tile_r),)
    kernel = _make_logmel_kernel(is_log, amin, ref)

    out2d = pl.pallas_call(
        kernel,
        out_shape=jax.ShapeDtypeStruct((rows, n_mels), jnp.float32),
        grid=grid,
        in_specs=[
            pl.BlockSpec((tile_r, n_bins), lambda i: (i, 0)),   # x: tiled over rows
            pl.BlockSpec((n_bins, n_mels), lambda i: (0, 0)),   # melW: VMEM-resident
        ],
        out_specs=pl.BlockSpec((tile_r, n_mels), lambda i: (i, 0)),
        compiler_params=pltpu.CompilerParams(
            # Row tiles are independent (top_db clamp hoisted to the wrapper),
            # so the axis can be sharded across TensorCores on v7x.
            dimension_semantics=("parallel",),
        ),
    )(x2d, w)

    if is_log and top_db is not None:
        # Global-max top_db clamp, exact semantics of the module, applied once
        # over the (rows, n_mels) output (tiny vs. the x read traffic).
        max_val = jnp.max(out2d)
        out2d = jnp.maximum(out2d, max_val - jnp.float32(top_db))

    return out2d.reshape(orig_shape[:-1] + (n_mels,))


# ----------------------------------------------------------------------------
# Pure-numpy reference (mirrors the PyTorch forward exactly)
# ----------------------------------------------------------------------------

def reference_forward(x, melW, *, is_log=True, ref=1.0, amin=1e-10, top_db=80.0):
    mel = x.astype(np.float32) @ melW.astype(np.float32)
    if not is_log:
        return mel
    log_spec = 10.0 * np.log10(np.clip(mel, amin, np.inf))
    log_spec -= 10.0 * np.log10(np.maximum(amin, ref))
    if top_db is not None:
        log_spec = np.clip(log_spec, log_spec.max() - top_db, np.inf)
    return log_spec.astype(np.float32)


if __name__ == "__main__":
    # Module defaults: sr=22050, n_fft=2048, n_mels=64 -> n_bins = 1025
    sr, n_fft, n_mels = 22050, 2048, 64
    n_bins = 1 + n_fft // 2

    # melW = mel(...).T  -> (n_bins, n_mels)
    melW_np = custom_mel_filterbank(sr, n_fft, n_mels).T.astype(np.float32)
    melW = jnp.asarray(melW_np)

    key = jax.random.PRNGKey(0)

    # --- Case 1: small shape consistent with the module: (batch=2, time=8, n_bins)
    x_small = jnp.square(jax.random.normal(key, (2, 8, n_bins), dtype=jnp.float32))
    out_small = logmel_filterbank(x_small, melW)
    out_small = jax.block_until_ready(out_small)
    ref_small = reference_forward(
        np.asarray(x_small).reshape(-1, n_bins), melW_np).reshape(2, 8, n_mels)
    np.testing.assert_allclose(np.asarray(out_small), ref_small, rtol=1e-3, atol=1e-3)

    # --- Case 2: exercise the multi-tile + ragged-last-block path
    # (batch=2, time=100 -> rows=200, forced tile_rows=64 -> grid of 4 tiles,
    #  last tile covers only 8 valid rows; remainder is masked by Pallas).
    key2 = jax.random.PRNGKey(1)
    x_big = jnp.square(jax.random.normal(key2, (2, 100, n_bins), dtype=jnp.float32))
    out_big = logmel_filterbank(x_big, melW, tile_rows=64)
    out_big = jax.block_until_ready(out_big)
    ref_big = reference_forward(
        np.asarray(x_big).reshape(-1, n_bins), melW_np).reshape(2, 100, n_mels)
    np.testing.assert_allclose(np.asarray(out_big), ref_big, rtol=1e-3, atol=1e-3)

    print("KERNEL_OK")
</pallas_src>

<mosaic_0001>
module attributes {stable_mosaic.version = 11 : i64} {
  func.func @kernel(%arg0: i32, %arg1: memref<16x1025xf32, #tpu.memory_space<vmem>>, %arg2: memref<1025x64xf32, #tpu.memory_space<vmem>>, %arg3: memref<16x64xf32, #tpu.memory_space<vmem>>) attributes {dimension_semantics = [#tpu.dimension_semantics<parallel>], iteration_bounds = array<i64: 1>, scalar_prefetch = 0 : i64, scratch_operands = 0 : i64, tpu.core_type = #tpu.core_type<tc>, window_params = [{transform_indices = @transform_0, window_bounds = array<i64: 16, 1025>}, {pipeline_mode = #tpu.pipeline_mode<synchronous>, transform_indices = @transform_1, window_bounds = array<i64: 1025, 64>}, {transform_indices = @transform_2, window_bounds = array<i64: 16, 64>}]} {
    %c0 = arith.constant 0 : index
    %c0_0 = arith.constant 0 : index
    %0 = vector.load %arg1[%c0, %c0_0] : memref<16x1025xf32, #tpu.memory_space<vmem>>, vector<16x1025xf32>
    %c0_1 = arith.constant 0 : index
    %c0_2 = arith.constant 0 : index
    %1 = vector.load %arg2[%c0_1, %c0_2] : memref<1025x64xf32, #tpu.memory_space<vmem>>, vector<1025x64xf32>
    %cst = arith.constant dense<0.000000e+00> : vector<16x64xf32>
    %2 = tpu.matmul %0, %1, %cst {dimension_numbers = #tpu.dot_dimension_numbers<[1], [0], [0], [1], [0, 0, 1, 1], [], []>} : vector<16x1025xf32>, vector<1025x64xf32>, vector<16x64xf32> -> vector<16x64xf32>
    %cst_3 = arith.constant 1.000000e-10 : f32
    %3 = vector.broadcast %cst_3 : f32 to vector<16x64xf32>
    %4 = arith.maximumf %2, %3 : vector<16x64xf32>
    %5 = math.log %4 : vector<16x64xf32>
    %cst_4 = arith.constant 4.34294462 : f32
    %6 = vector.broadcast %cst_4 : f32 to vector<16x64xf32>
    %7 = arith.mulf %5, %6 : vector<16x64xf32>
    %cst_5 = arith.constant 0.000000e+00 : f32
    %8 = vector.broadcast %cst_5 : f32 to vector<16x64xf32>
    %9 = arith.subf %7, %8 : vector<16x64xf32>
    %c0_6 = arith.constant 0 : index
    %c0_7 = arith.constant 0 : index
    %10 = vector.load %arg3[%c0_6, %c0_7] : memref<16x64xf32, #tpu.memory_space<vmem>>, vector<16x64xf32>
    tpu.vector_store %arg3[%c0_6, %c0_7], %9 {strides = array<i32>} : memref<16x64xf32, #tpu.memory_space<vmem>>, vector<16x64xf32>,
    return
  }
  func.func @transform_0(%arg0: i32) -> (i32, i32) {
    %c0_i32 = arith.constant 0 : i32
    %c0_i32_0 = arith.constant 0 : i32
    return %arg0, %c0_i32 : i32, i32
  }
  func.func @transform_1(%arg0: i32) -> (i32, i32) {
    %c0_i32 = arith.constant 0 : i32
    %c0_i32_0 = arith.constant 0 : i32
    %c0_i32_1 = arith.constant 0 : i32
    return %c0_i32, %c0_i32_0 : i32, i32
  }
  func.func @transform_2(%arg0: i32) -> (i32, i32) {
    %c0_i32 = arith.constant 0 : i32
    %c0_i32_0 = arith.constant 0 : i32
    return %arg0, %c0_i32 : i32, i32
  }
}

</mosaic_0001>

<llo_original>
// kernel: tpu_custom_call.1
$region0: #{tpu_custom_call.1}
  #allocation0 [shape = 'u32[]', space=smem, size = 0x4, offset = 0x4, fixed_abs, tag = 'smem constant byte address 0x4 - core index']
  #allocation1 [shape = 'u32[144,128]{1,0:T(1,128)}', space=vmem, size = 0x12000, scoped, tag = 'internal scratch']
  %s0 = inlined_call_operand.vmem [shape: f32[16,1025], index: 0, kind: input, shape index: {}]
  %s1 = inlined_call_operand.vmem [shape: f32[1025,64], index: 1, kind: input, shape index: {}]
  %s2 = inlined_call_operand.hbm [shape: f32[16,64], index: 2, kind: output, shape index: {}]
  %s3 = sld [smem:[#allocation0]]
  $region18: #{tpu_custom_call.1} parent=0
    _
  %s5 = ssub.s32 1, %s3
  %s6 = scalar_select 0, %s5, %s3
  $region1: #{tpu_custom_call.1} parent=0
    #allocation2 [shape = 'u8[8192]{0}', space=vmem, size = 0x2000, scoped, tag = 'output window, operand 0, single buffered']
    #allocation3 [shape = 's32[1]{0}', space=sflag, size = 0x4, scoped, tag = 'scoped memory for tpu_custom_call.1']
    %7 = vsyncpa [#allocation3], 0
    // Predicated region
    $region2: #{tpu_custom_call.1} parent=1 // pred_check
      _
    $region3: #{tpu_custom_call.1} parent=1 // pred_check_branch
      %9 = sbr.rel (0) target = $region5
    $region4: #{tpu_custom_call.1} parent=1 // pred_region
      _
    $region5: #{tpu_custom_call.1} parent=1 // pred_fallthru
      _
    // Predicated region
    $region6: #{tpu_custom_call.1} parent=1 // pred_check
      _
    $region7: #{tpu_custom_call.1} parent=1 // pred_check_branch
      %11 = sbr.rel (0) target = $region9
    $region8: #{tpu_custom_call.1} parent=1 // pred_region
      _
    $region9: #{tpu_custom_call.1} parent=1 // pred_fallthru
      _
    %v12 = vld [vmem:[%s0] sm:$0xff]
    %v13 = vld [vmem:[%s0 + $0x8] sm:$0xff]
    %v14 = vld [vmem:[%s0 + $0x10] sm:$0xff]
    %v15 = vld [vmem:[%s0 + $0x18] sm:$0xff]
    %v16 = vld [vmem:[%s0 + $0x20] sm:$0xff]
    %v17 = vld [vmem:[%s0 + $0x28] sm:$0xff]
    %v18 = vld [vmem:[%s0 + $0x30] sm:$0xff]
    %v19 = vld [vmem:[%s0 + $0x38] sm:$0xff]
    %v20 = vld [vmem:[%s0 + $0x40] sm:$0xff]
    %v21 = vld [vmem:[%s0 + $0x48] sm:$0xff]
    %v22 = vld [vmem:[%s0 + $0x50] sm:$0xff]
    %v23 = vld [vmem:[%s0 + $0x58] sm:$0xff]
    %v24 = vld [vmem:[%s0 + $0x60] sm:$0xff]
    %v25 = vld [vmem:[%s0 + $0x68] sm:$0xff]
    %v26 = vld [vmem:[%s0 + $0x70] sm:$0xff]
    %v27 = vld [vmem:[%s0 + $0x78] sm:$0xff]
    %v28 = vld [vmem:[%s0 + $0x80] sm:$0xff]
    %v29 = vld [vmem:[%s0 + $0x88] sm:$0xff]
    %v30 = vld [vmem:[%s1] sm:$0xff]
    %v31 = vld [vmem:[%s1 + $0x8] sm:$0xff]
    %v32 = vld [vmem:[%s1 + $0x10] sm:$0xff]
    %v33 = vld [vmem:[%s1 + $0x18] sm:$0xff]
    %v34 = vld [vmem:[%s1 + $0x20] sm:$0xff]
    %v35 = vld [vmem:[%s1 + $0x28] sm:$0xff]
    %v36 = vld [vmem:[%s1 + $0x30] sm:$0xff]
    %v37 = vld [vmem:[%s1 + $0x38] sm:$0xff]
    %v38 = vld [vmem:[%s1 + $0x40] sm:$0xff]
    %v39 = vld [vmem:[%s1 + $0x48] sm:$0xff]
    %v40 = vld [vmem:[%s1 + $0x50] sm:$0xff]
    %v41 = vld [vmem:[%s1 + $0x58] sm:$0xff]
    %v42 = vld [vmem:[%s1 + $0x60] sm:$0xff]
    %v43 = vld [vmem:[%s1 + $0x68] sm:$0xff]
    %v44 = vld [vmem:[%s1 + $0x70] sm:$0xff]
    %v45 = vld [vmem:[%s1 + $0x78] sm:$0xff]
    %v46 = vld [vmem:[%s1 + $0x80] sm:$0xff]
    %v47 = vld [vmem:[%s1 + $0x88] sm:$0xff]
    %v48 = vld [vmem:[%s1 + $0x90] sm:$0xff]
    %v49 = vld [vmem:[%s1 + $0x98] sm:$0xff]
    %v50 = vld [vmem:[%s1 + $0xa0] sm:$0xff]
    %v51 = vld [vmem:[%s1 + $0xa8] sm:$0xff]
    %v52 = vld [vmem:[%s1 + $0xb0] sm:$0xff]
    %v53 = vld [vmem:[%s1 + $0xb8] sm:$0xff]
    %v54 = vld [vmem:[%s1 + $0xc0] sm:$0xff]
    %v55 = vld [vmem:[%s1 + $0xc8] sm:$0xff]
    %v56 = vld [vmem:[%s1 + $0xd0] sm:$0xff]
    %v57 = vld [vmem:[%s1 + $0xd8] sm:$0xff]
    %v58 = vld [vmem:[%s1 + $0xe0] sm:$0xff]
    %v59 = vld [vmem:[%s1 + $0xe8] sm:$0xff]
    %v60 = vld [vmem:[%s1 + $0xf0] sm:$0xff]
    %v61 = vld [vmem:[%s1 + $0xf8] sm:$0xff]
    %v62 = vld [vmem:[%s1 + $0x100] sm:$0xff]
    %v63 = vld [vmem:[%s1 + $0x108] sm:$0xff]
    %v64 = vld [vmem:[%s1 + $0x110] sm:$0xff]
    %v65 = vld [vmem:[%s1 + $0x118] sm:$0xff]
    %v66 = vld [vmem:[%s1 + $0x120] sm:$0xff]
    %v67 = vld [vmem:[%s1 + $0x128] sm:$0xff]
    %v68 = vld [vmem:[%s1 + $0x130] sm:$0xff]
    %v69 = vld [vmem:[%s1 + $0x138] sm:$0xff]
    %v70 = vld [vmem:[%s1 + $0x140] sm:$0xff]
    %v71 = vld [vmem:[%s1 + $0x148] sm:$0xff]
    %v72 = vld [vmem:[%s1 + $0x150] sm:$0xff]
    %v73 = vld [vmem:[%s1 + $0x158] sm:$0xff]
    %v74 = vld [vmem:[%s1 + $0x160] sm:$0xff]
    %v75 = vld [vmem:[%s1 + $0x168] sm:$0xff]
    %v76 = vld [vmem:[%s1 + $0x170] sm:$0xff]
    %v77 = vld [vmem:[%s1 + $0x178] sm:$0xff]
    %v78 = vld [vmem:[%s1 + $0x180] sm:$0xff]
    %v79 = vld [vmem:[%s1 + $0x188] sm:$0xff]
    %v80 = vld [vmem:[%s1 + $0x190] sm:$0xff]
    %v81 = vld [vmem:[%s1 + $0x198] sm:$0xff]
    %v82 = vld [vmem:[%s1 + $0x1a0] sm:$0xff]
    %v83 = vld [vmem:[%s1 + $0x1a8] sm:$0xff]
    %v84 = vld [vmem:[%s1 + $0x1b0] sm:$0xff]
    %v85 = vld [vmem:[%s1 + $0x1b8] sm:$0xff]
    %v86 = vld [vmem:[%s1 + $0x1c0] sm:$0xff]
    %v87 = vld [vmem:[%s1 + $0x1c8] sm:$0xff]
    %v88 = vld [vmem:[%s1 + $0x1d0] sm:$0xff]
    %v89 = vld [vmem:[%s1 + $0x1d8] sm:$0xff]
    %v90 = vld [vmem:[%s1 + $0x1e0] sm:$0xff]
    %v91 = vld [vmem:[%s1 + $0x1e8] sm:$0xff]
    %v92 = vld [vmem:[%s1 + $0x1f0] sm:$0xff]
    %v93 = vld [vmem:[%s1 + $0x1f8] sm:$0xff]
    %v94 = vld [vmem:[%s1 + $0x200] sm:$0xff]
    %v95 = vld [vmem:[%s1 + $0x208] sm:$0xff]
    %v96 = vld [vmem:[%s1 + $0x210] sm:$0xff]
    %v97 = vld [vmem:[%s1 + $0x218] sm:$0xff]
    %v98 = vld [vmem:[%s1 + $0x220] sm:$0xff]
    %v99 = vld [vmem:[%s1 + $0x228] sm:$0xff]
    %v100 = vld [vmem:[%s1 + $0x230] sm:$0xff]
    %v101 = vld [vmem:[%s1 + $0x238] sm:$0xff]
    %v102 = vld [vmem:[%s1 + $0x240] sm:$0xff]
    %v103 = vld [vmem:[%s1 + $0x248] sm:$0xff]
    %v104 = vld [vmem:[%s1 + $0x250] sm:$0xff]
    %v105 = vld [vmem:[%s1 + $0x258] sm:$0xff]
    %v106 = vld [vmem:[%s1 + $0x260] sm:$0xff]
    %v107 = vld [vmem:[%s1 + $0x268] sm:$0xff]
    %v108 = vld [vmem:[%s1 + $0x270] sm:$0xff]
    %v109 = vld [vmem:[%s1 + $0x278] sm:$0xff]
    %v110 = vld [vmem:[%s1 + $0x280] sm:$0xff]
    %v111 = vld [vmem:[%s1 + $0x288] sm:$0xff]
    %v112 = vld [vmem:[%s1 + $0x290] sm:$0xff]
    %v113 = vld [vmem:[%s1 + $0x298] sm:$0xff]
    %v114 = vld [vmem:[%s1 + $0x2a0] sm:$0xff]
    %v115 = vld [vmem:[%s1 + $0x2a8] sm:$0xff]
    %v116 = vld [vmem:[%s1 + $0x2b0] sm:$0xff]
    %v117 = vld [vmem:[%s1 + $0x2b8] sm:$0xff]
    %v118 = vld [vmem:[%s1 + $0x2c0] sm:$0xff]
    %v119 = vld [vmem:[%s1 + $0x2c8] sm:$0xff]
    %v120 = vld [vmem:[%s1 + $0x2d0] sm:$0xff]
    %v121 = vld [vmem:[%s1 + $0x2d8] sm:$0xff]
    %v122 = vld [vmem:[%s1 + $0x2e0] sm:$0xff]
    %v123 = vld [vmem:[%s1 + $0x2e8] sm:$0xff]
    %v124 = vld [vmem:[%s1 + $0x2f0] sm:$0xff]
    %v125 = vld [vmem:[%s1 + $0x2f8] sm:$0xff]
    %v126 = vld [vmem:[%s1 + $0x300] sm:$0xff]
    %v127 = vld [vmem:[%s1 + $0x308] sm:$0xff]
    %v128 = vld [vmem:[%s1 + $0x310] sm:$0xff]
    %v129 = vld [vmem:[%s1 + $0x318] sm:$0xff]
    %v130 = vld [vmem:[%s1 + $0x320] sm:$0xff]
    %v131 = vld [vmem:[%s1 + $0x328] sm:$0xff]
    %v132 = vld [vmem:[%s1 + $0x330] sm:$0xff]
    %v133 = vld [vmem:[%s1 + $0x338] sm:$0xff]
    %v134 = vld [vmem:[%s1 + $0x340] sm:$0xff]
    %v135 = vld [vmem:[%s1 + $0x348] sm:$0xff]
    %v136 = vld [vmem:[%s1 + $0x350] sm:$0xff]
    %v137 = vld [vmem:[%s1 + $0x358] sm:$0xff]
    %v138 = vld [vmem:[%s1 + $0x360] sm:$0xff]
    %v139 = vld [vmem:[%s1 + $0x368] sm:$0xff]
    %v140 = vld [vmem:[%s1 + $0x370] sm:$0xff]
    %v141 = vld [vmem:[%s1 + $0x378] sm:$0xff]
    %v142 = vld [vmem:[%s1 + $0x380] sm:$0xff]
    %v143 = vld [vmem:[%s1 + $0x388] sm:$0xff]
    %v144 = vld [vmem:[%s1 + $0x390] sm:$0xff]
    %v145 = vld [vmem:[%s1 + $0x398] sm:$0xff]
    %v146 = vld [vmem:[%s1 + $0x3a0] sm:$0xff]
    %v147 = vld [vmem:[%s1 + $0x3a8] sm:$0xff]
    %v148 = vld [vmem:[%s1 + $0x3b0] sm:$0xff]
    %v149 = vld [vmem:[%s1 + $0x3b8] sm:$0xff]
    %v150 = vld [vmem:[%s1 + $0x3c0] sm:$0xff]
    %v151 = vld [vmem:[%s1 + $0x3c8] sm:$0xff]
    %v152 = vld [vmem:[%s1 + $0x3d0] sm:$0xff]
    %v153 = vld [vmem:[%s1 + $0x3d8] sm:$0xff]
    %v154 = vld [vmem:[%s1 + $0x3e0] sm:$0xff]
    %v155 = vld [vmem:[%s1 + $0x3e8] sm:$0xff]
    %v156 = vld [vmem:[%s1 + $0x3f0] sm:$0xff]
    %v157 = vld [vmem:[%s1 + $0x3f8] sm:$0xff]
    %v158 = vld [vmem:[%s1 + $0x400] sm:$0x1]
    %vm159 = vcmask 7168
    %v161 = vsel %vm159, %v20, 0
    %v164 = vsel %vm159, %v29, 0
    %vm166 = vcmask 1040384
    %v168 = vsel %vm166, %v158, 0
    %170 = vmatprep.subr.mxu0 0.0
    %171 = vmatpush1.msra.mxu0 %v45
    %172 = vmatprep.subr.mxu0 0.0
    %173 = vmatpush1.msra.mxu0 %v44
    %174 = vmatprep.subr.mxu0 0.0
    %175 = vmatpush1.msra.mxu0 %v43
    %176 = vmatprep.subr.mxu0 0.0
    %177 = vmatpush1.msra.mxu0 %v42
    %178 = vmatprep.subr.mxu0 0.0
    %179 = vmatpush1.msra.mxu0 %v41
    %180 = vmatprep.subr.mxu0 0.0
    %181 = vmatpush1.msra.mxu0 %v40
    %182 = vmatprep.subr.mxu0 0.0
    %183 = vmatpush1.msra.mxu0 %v39
    %184 = vmatprep.subr.mxu0 0.0
    %185 = vmatpush1.msra.mxu0 %v38
    %186 = vmatprep.subr.mxu0 0.0
    %187 = vmatpush1.msra.mxu0 %v37
    %188 = vmatprep.subr.mxu0 0.0
    %189 = vmatpush1.msra.mxu0 %v36
    %190 = vmatprep.subr.mxu0 0.0
    %191 = vmatpush1.msra.mxu0 %v35
    %192 = vmatprep.subr.mxu0 0.0
    %193 = vmatpush1.msra.mxu0 %v34
    %194 = vmatprep.subr.mxu0 0.0
    %195 = vmatpush1.msra.mxu0 %v33
    %196 = vmatprep.subr.mxu0 0.0
    %197 = vmatpush1.msra.mxu0 %v32
    %198 = vmatprep.subr.mxu0 0.0
    %199 = vmatpush1.msra.mxu0 %v31
    %200 = vmatprep.subr.mxu0 0.0
    %201 = vmatpush1.msra.mxu0 %v30
    %202 = vmatprep.subr.mxu0 0.0
    %203 = vmatpush2.msra.mxu0 %v61
    %204 = vmatprep.subr.mxu0 0.0
    %205 = vmatpush2.msra.mxu0 %v60
    %206 = vmatprep.subr.mxu0 0.0
    %207 = vmatpush2.msra.mxu0 %v59
    %208 = vmatprep.subr.mxu0 0.0
    %209 = vmatpush2.msra.mxu0 %v58
    %210 = vmatprep.subr.mxu0 0.0
    %211 = vmatpush2.msra.mxu0 %v57
    %212 = vmatprep.subr.mxu0 0.0
    %213 = vmatpush2.msra.mxu0 %v56
    %214 = vmatprep.subr.mxu0 0.0
    %215 = vmatpush2.msra.mxu0 %v55
    %216 = vmatprep.subr.mxu0 0.0
    %217 = vmatpush2.msra.mxu0 %v54
    %218 = vmatprep.subr.mxu0 0.0
    %219 = vmatpush2.msra.mxu0 %v53
    %220 = vmatprep.subr.mxu0 0.0
    %221 = vmatpush2.msra.mxu0 %v52
    %222 = vmatprep.subr.mxu0 0.0
    %223 = vmatpush2.msra.mxu0 %v51
    %224 = vmatprep.subr.mxu0 0.0
    %225 = vmatpush2.msra.mxu0 %v50
    %226 = vmatprep.subr.mxu0 0.0
    %227 = vmatpush2.msra.mxu0 %v49
    %228 = vmatprep.subr.mxu0 0.0
    %229 = vmatpush2.msra.mxu0 %v48
    %230 = vmatprep.subr.mxu0 0.0
    %231 = vmatpush2.msra.mxu0 %v47
    %232 = vmatprep.subr.mxu0 0.0
    %233 = vmatpush2.msra.mxu0 %v46
    %234 = vmatprep.mubr.f32.mxu0 %v13
    %235 = vmatmul.mubr.f32.gmra.mxu0 %v12
    %v236 = vpop.f32.mrf.mxu0
    %v237 = vadd.f32 0.0, %v236
    %v238 = vpop.f32.mrf.mxu0
    %239 = vmatprep.mubr.f32.mxu0 %v22
    %240 = vmatmul.mubr.f32.gmra.mxu0 %v21
    %v241 = vpop.f32.mrf.mxu0
    %v242 = vadd.f32 0.0, %v241
    %v243 = vpop.f32.mrf.mxu0
    %244 = vdwg.mxu0
    %245 = vmatprep.subr.mxu0 0.0
    %246 = vmatpush1.msra.mxu0 %v77
    %247 = vmatprep.subr.mxu0 0.0
    %248 = vmatpush1.msra.mxu0 %v76
    %249 = vmatprep.subr.mxu0 0.0
    %250 = vmatpush1.msra.mxu0 %v75
    %251 = vmatprep.subr.mxu0 0.0
    %252 = vmatpush1.msra.mxu0 %v74
    %253 = vmatprep.subr.mxu0 0.0
    %254 = vmatpush1.msra.mxu0 %v73
    %255 = vmatprep.subr.mxu0 0.0
    %256 = vmatpush1.msra.mxu0 %v72
    %257 = vmatprep.subr.mxu0 0.0
    %258 = vmatpush1.msra.mxu0 %v71
    %259 = vmatprep.subr.mxu0 0.0
    %260 = vmatpush1.msra.mxu0 %v70
    %261 = vmatprep.subr.mxu0 0.0
    %262 = vmatpush1.msra.mxu0 %v69
    %263 = vmatprep.subr.mxu0 0.0
    %264 = vmatpush1.msra.mxu0 %v68
    %265 = vmatprep.subr.mxu0 0.0
    %266 = vmatpush1.msra.mxu0 %v67
    %267 = vmatprep.subr.mxu0 0.0
    %268 = vmatpush1.msra.mxu0 %v66
    %269 = vmatprep.subr.mxu0 0.0
    %270 = vmatpush1.msra.mxu0 %v65
    %271 = vmatprep.subr.mxu0 0.0
    %272 = vmatpush1.msra.mxu0 %v64
    %273 = vmatprep.subr.mxu0 0.0
    %274 = vmatpush1.msra.mxu0 %v63
    %275 = vmatprep.subr.mxu0 0.0
    %276 = vmatpush1.msra.mxu0 %v62
    %277 = vmatprep.subr.mxu0 0.0
    %278 = vmatpush2.msra.mxu0 %v93
    %279 = vmatprep.subr.mxu0 0.0
    %280 = vmatpush2.msra.mxu0 %v92
    %281 = vmatprep.subr.mxu0 0.0
    %282 = vmatpush2.msra.mxu0 %v91
    %283 = vmatprep.subr.mxu0 0.0
    %284 = vmatpush2.msra.mxu0 %v90
    %285 = vmatprep.subr.mxu0 0.0
    %286 = vmatpush2.msra.mxu0 %v89
    %287 = vmatprep.subr.mxu0 0.0
    %288 = vmatpush2.msra.mxu0 %v88
    %289 = vmatprep.subr.mxu0 0.0
    %290 = vmatpush2.msra.mxu0 %v87
    %291 = vmatprep.subr.mxu0 0.0
    %292 = vmatpush2.msra.mxu0 %v86
    %293 = vmatprep.subr.mxu0 0.0
    %294 = vmatpush2.msra.mxu0 %v85
    %295 = vmatprep.subr.mxu0 0.0
    %296 = vmatpush2.msra.mxu0 %v84
    %297 = vmatprep.subr.mxu0 0.0
    %298 = vmatpush2.msra.mxu0 %v83
    %299 = vmatprep.subr.mxu0 0.0
    %300 = vmatpush2.msra.mxu0 %v82
    %301 = vmatprep.subr.mxu0 0.0
    %302 = vmatpush2.msra.mxu0 %v81
    %303 = vmatprep.subr.mxu0 0.0
    %304 = vmatpush2.msra.mxu0 %v80
    %305 = vmatprep.subr.mxu0 0.0
    %306 = vmatpush2.msra.mxu0 %v79
    %307 = vmatprep.subr.mxu0 0.0
    %308 = vmatpush2.msra.mxu0 %v78
    %309 = vmatprep.mubr.f32.mxu0 %v15
    %310 = vmatmul.mubr.f32.gmra.mxu0 %v14
    %v311 = vpop.f32.mrf.mxu0
    %v312 = vadd.f32 %v237, %v311
    %v313 = vpop.f32.mrf.mxu0
    %314 = vmatprep.mubr.f32.mxu0 %v24
    %315 = vmatmul.mubr.f32.gmra.mxu0 %v23
    %v316 = vpop.f32.mrf.mxu0
    %v317 = vadd.f32 %v242, %v316
    %v318 = vpop.f32.mrf.mxu0
    %319 = vdwg.mxu0
    %320 = vmatprep.subr.mxu0 0.0
    %321 = vmatpush1.msra.mxu0 %v109
    %322 = vmatprep.subr.mxu0 0.0
    %323 = vmatpush1.msra.mxu0 %v108
    %324 = vmatprep.subr.mxu0 0.0
    %325 = vmatpush1.msra.mxu0 %v107
    %326 = vmatprep.subr.mxu0 0.0
    %327 = vmatpush1.msra.mxu0 %v106
    %328 = vmatprep.subr.mxu0 0.0
    %329 = vmatpush1.msra.mxu0 %v105
    %330 = vmatprep.subr.mxu0 0.0
    %331 = vmatpush1.msra.mxu0 %v104
    %332 = vmatprep.subr.mxu0 0.0
    %333 = vmatpush1.msra.mxu0 %v103
    %334 = vmatprep.subr.mxu0 0.0
    %335 = vmatpush1.msra.mxu0 %v102
    %336 = vmatprep.subr.mxu0 0.0
    %337 = vmatpush1.msra.mxu0 %v101
    %338 = vmatprep.subr.mxu0 0.0
    %339 = vmatpush1.msra.mxu0 %v100
    %340 = vmatprep.subr.mxu0 0.0
    %341 = vmatpush1.msra.mxu0 %v99
    %342 = vmatprep.subr.mxu0 0.0
    %343 = vmatpush1.msra.mxu0 %v98
    %344 = vmatprep.subr.mxu0 0.0
    %345 = vmatpush1.msra.mxu0 %v97
    %346 = vmatprep.subr.mxu0 0.0
    %347 = vmatpush1.msra.mxu0 %v96
    %348 = vmatprep.subr.mxu0 0.0
    %349 = vmatpush1.msra.mxu0 %v95
    %350 = vmatprep.subr.mxu0 0.0
    %351 = vmatpush1.msra.mxu0 %v94
    %352 = vmatprep.subr.mxu0 0.0
    %353 = vmatpush2.msra.mxu0 %v125
    %354 = vmatprep.subr.mxu0 0.0
    %355 = vmatpush2.msra.mxu0 %v124
    %356 = vmatprep.subr.mxu0 0.0
    %357 = vmatpush2.msra.mxu0 %v123
    %358 = vmatprep.subr.mxu0 0.0
    %359 = vmatpush2.msra.mxu0 %v122
    %360 = vmatprep.subr.mxu0 0.0
    %361 = vmatpush2.msra.mxu0 %v121
    %362 = vmatprep.subr.mxu0 0.0
    %363 = vmatpush2.msra.mxu0 %v120
    %364 = vmatprep.subr.mxu0 0.0
    %365 = vmatpush2.msra.mxu0 %v119
    %366 = vmatprep.subr.mxu0 0.0
    %367 = vmatpush2.msra.mxu0 %v118
    %368 = vmatprep.subr.mxu0 0.0
    %369 = vmatpush2.msra.mxu0 %v117
    %370 = vmatprep.subr.mxu0 0.0
    %371 = vmatpush2.msra.mxu0 %v116
    %372 = vmatprep.subr.mxu0 0.0
    %373 = vmatpush2.msra.mxu0 %v115
    %374 = vmatprep.subr.mxu0 0.0
    %375 = vmatpush2.msra.mxu0 %v114
    %376 = vmatprep.subr.mxu0 0.0
    %377 = vmatpush2.msra.mxu0 %v113
    %378 = vmatprep.subr.mxu0 0.0
    %379 = vmatpush2.msra.mxu0 %v112
    %380 = vmatprep.subr.mxu0 0.0
    %381 = vmatpush2.msra.mxu0 %v111
    %382 = vmatprep.subr.mxu0 0.0
    %383 = vmatpush2.msra.mxu0 %v110
    %384 = vmatprep.mubr.f32.mxu0 %v17
    %385 = vmatmul.mubr.f32.gmra.mxu0 %v16
    %v386 = vpop.f32.mrf.mxu0
    %v387 = vadd.f32 %v312, %v386
    %v388 = vpop.f32.mrf.mxu0
    %389 = vmatprep.mubr.f32.mxu0 %v26
    %390 = vmatmul.mubr.f32.gmra.mxu0 %v25
    %v391 = vpop.f32.mrf.mxu0
    %v392 = vadd.f32 %v317, %v391
    %v393 = vpop.f32.mrf.mxu0
    %394 = vdwg.mxu0
    %395 = vmatprep.subr.mxu0 0.0
    %396 = vmatpush1.msra.mxu0 %v141
    %397 = vmatprep.subr.mxu0 0.0
    %398 = vmatpush1.msra.mxu0 %v140
    %399 = vmatprep.subr.mxu0 0.0
    %400 = vmatpush1.msra.mxu0 %v139
    %401 = vmatprep.subr.mxu0 0.0
    %402 = vmatpush1.msra.mxu0 %v138
    %403 = vmatprep.subr.mxu0 0.0
    %404 = vmatpush1.msra.mxu0 %v137
    %405 = vmatprep.subr.mxu0 0.0
    %406 = vmatpush1.msra.mxu0 %v136
    %407 = vmatprep.subr.mxu0 0.0
    %408 = vmatpush1.msra.mxu0 %v135
    %409 = vmatprep.subr.mxu0 0.0
    %410 = vmatpush1.msra.mxu0 %v134
    %411 = vmatprep.subr.mxu0 0.0
    %412 = vmatpush1.msra.mxu0 %v133
    %413 = vmatprep.subr.mxu0 0.0
    %414 = vmatpush1.msra.mxu0 %v132
    %415 = vmatprep.subr.mxu0 0.0
    %416 = vmatpush1.msra.mxu0 %v131
    %417 = vmatprep.subr.mxu0 0.0
    %418 = vmatpush1.msra.mxu0 %v130
    %419 = vmatprep.subr.mxu0 0.0
    %420 = vmatpush1.msra.mxu0 %v129
    %421 = vmatprep.subr.mxu0 0.0
    %422 = vmatpush1.msra.mxu0 %v128
    %423 = vmatprep.subr.mxu0 0.0
    %424 = vmatpush1.msra.mxu0 %v127
    %425 = vmatprep.subr.mxu0 0.0
    %426 = vmatpush1.msra.mxu0 %v126
    %427 = vmatprep.subr.mxu0 0.0
    %428 = vmatpush2.msra.mxu0 %v157
    %429 = vmatprep.subr.mxu0 0.0
    %430 = vmatpush2.msra.mxu0 %v156
    %431 = vmatprep.subr.mxu0 0.0
    %432 = vmatpush2.msra.mxu0 %v155
    %433 = vmatprep.subr.mxu0 0.0
    %434 = vmatpush2.msra.mxu0 %v154
    %435 = vmatprep.subr.mxu0 0.0
    %436 = vmatpush2.msra.mxu0 %v153
    %437 = vmatprep.subr.mxu0 0.0
    %438 = vmatpush2.msra.mxu0 %v152
    %439 = vmatprep.subr.mxu0 0.0
    %440 = vmatpush2.msra.mxu0 %v151
    %441 = vmatprep.subr.mxu0 0.0
    %442 = vmatpush2.msra.mxu0 %v150
    %443 = vmatprep.subr.mxu0 0.0
    %444 = vmatpush2.msra.mxu0 %v149
    %445 = vmatprep.subr.mxu0 0.0
    %446 = vmatpush2.msra.mxu0 %v148
    %447 = vmatprep.subr.mxu0 0.0
    %448 = vmatpush2.msra.mxu0 %v147
    %449 = vmatprep.subr.mxu0 0.0
    %450 = vmatpush2.msra.mxu0 %v146
    %451 = vmatprep.subr.mxu0 0.0
    %452 = vmatpush2.msra.mxu0 %v145
    %453 = vmatprep.subr.mxu0 0.0
    %454 = vmatpush2.msra.mxu0 %v144
    %455 = vmatprep.subr.mxu0 0.0
    %456 = vmatpush2.msra.mxu0 %v143
    %457 = vmatprep.subr.mxu0 0.0
    %458 = vmatpush2.msra.mxu0 %v142
    %459 = vmatprep.mubr.f32.mxu0 %v19
    %460 = vmatmul.mubr.f32.gmra.mxu0 %v18
    %v461 = vpop.f32.mrf.mxu0
    %v462 = vadd.f32 %v387, %v461
    %v463 = vpop.f32.mrf.mxu0
    %464 = vmatprep.mubr.f32.mxu0 %v28
    %465 = vmatmul.mubr.f32.gmra.mxu0 %v27
    %v466 = vpop.f32.mrf.mxu0
    %v467 = vadd.f32 %v392, %v466
    %v468 = vpop.f32.mrf.mxu0
    %469 = vdwg.mxu0
    %470 = vmatprep.subr.mxu0 0.0
    %471 = vmatpush1.msra.mxu0 0.0
    %472 = vmatprep.subr.mxu0 0.0
    %473 = vmatpush1.msra.mxu0 0.0
    %474 = vmatprep.subr.mxu0 0.0
    %475 = vmatpush1.msra.mxu0 0.0
    %476 = vmatprep.subr.mxu0 0.0
    %477 = vmatpush1.msra.mxu0 0.0
    %478 = vmatprep.subr.mxu0 0.0
    %479 = vmatpush1.msra.mxu0 0.0
    %480 = vmatprep.subr.mxu0 0.0
    %481 = vmatpush1.msra.mxu0 0.0
    %482 = vmatprep.subr.mxu0 0.0
    %483 = vmatpush1.msra.mxu0 0.0
    %484 = vmatprep.subr.mxu0 0.0
    %485 = vmatpush1.msra.mxu0 0.0
    %486 = vmatprep.subr.mxu0 0.0
    %487 = vmatpush1.msra.mxu0 0.0
    %488 = vmatprep.subr.mxu0 0.0
    %489 = vmatpush1.msra.mxu0 0.0
    %490 = vmatprep.subr.mxu0 0.0
    %491 = vmatpush1.msra.mxu0 0.0
    %492 = vmatprep.subr.mxu0 0.0
    %493 = vmatpush1.msra.mxu0 0.0
    %494 = vmatprep.subr.mxu0 0.0
    %495 = vmatpush1.msra.mxu0 0.0
    %496 = vmatprep.subr.mxu0 0.0
    %497 = vmatpush1.msra.mxu0 0.0
    %498 = vmatprep.subr.mxu0 0.0
    %499 = vmatpush1.msra.mxu0 0.0
    %500 = vmatprep.subr.mxu0 0.0
    %501 = vmatpush1.msra.mxu0 %v168
    %502 = vmatprep.subr.mxu0 0.0
    %503 = vmatpush2.msra.mxu0 0.0
    %504 = vmatprep.subr.mxu0 0.0
    %505 = vmatpush2.msra.mxu0 0.0
    %506 = vmatprep.subr.mxu0 0.0
    %507 = vmatpush2.msra.mxu0 0.0
    %508 = vmatprep.subr.mxu0 0.0
    %509 = vmatpush2.msra.mxu0 0.0
    %510 = vmatprep.subr.mxu0 0.0
    %511 = vmatpush2.msra.mxu0 0.0
    %512 = vmatprep.subr.mxu0 0.0
    %513 = vmatpush2.msra.mxu0 0.0
    %514 = vmatprep.subr.mxu0 0.0
    %515 = vmatpush2.msra.mxu0 0.0
    %516 = vmatprep.subr.mxu0 0.0
    %517 = vmatpush2.msra.mxu0 0.0
    %518 = vmatprep.subr.mxu0 0.0
    %519 = vmatpush2.msra.mxu0 0.0
    %520 = vmatprep.subr.mxu0 0.0
    %521 = vmatpush2.msra.mxu0 0.0
    %522 = vmatprep.subr.mxu0 0.0
    %523 = vmatpush2.msra.mxu0 0.0
    %524 = vmatprep.subr.mxu0 0.0
    %525 = vmatpush2.msra.mxu0 0.0
    %526 = vmatprep.subr.mxu0 0.0
    %527 = vmatpush2.msra.mxu0 0.0
    %528 = vmatprep.subr.mxu0 0.0
    %529 = vmatpush2.msra.mxu0 0.0
    %530 = vmatprep.subr.mxu0 0.0
    %531 = vmatpush2.msra.mxu0 0.0
    %532 = vmatprep.subr.mxu0 0.0
    %533 = vmatpush2.msra.mxu0 0.0
    %534 = vmatprep.mubr.f32.mxu0 0.0
    %535 = vmatmul.mubr.f32.gmra.mxu0 %v161
    %v536 = vpop.f32.mrf.mxu0
    %v537 = vadd.f32 %v462, %v536
    %v538 = vpop.f32.mrf.mxu0
    %539 = vmatprep.mubr.f32.mxu0 0.0
    %540 = vmatmul.mubr.f32.gmra.mxu0 %v164
    %v541 = vpop.f32.mrf.mxu0
    %v542 = vadd.f32 %v467, %v541
    %v543 = vpop.f32.mrf.mxu0
    %544 = vdwg.mxu0
    %v545 = vmax.f32 %v537, 1e-10
    %v546 = vmax.f32 %v542, 1e-10
    %v547 = vlog2.pop %v545
    %v548 = vmul.f32 %v547, 0.6931472
    %v549 = vlog2.pop %v546
    %v550 = vmul.f32 %v549, 0.6931472
    %v551 = vmul.f32 %v548, 4.3429446
    %v552 = vmul.f32 %v550, 4.3429446
    %vm553 = vcmask 523264
    %554 = vst.msk [vmem:[#allocation2] sm:$0xff] %vm553, %v551
    %555 = vst.msk [vmem:[#allocation2 + $0x8] sm:$0xff] %vm553, %v552
    // Predicated region
    $region10: #{tpu_custom_call.1} parent=1 // pred_check
      _
    $region11: #{tpu_custom_call.1} parent=1 // pred_check_branch
      %557 = sbr.rel (0) target = $region13
    $region12: #{tpu_custom_call.1} parent=1 // pred_region
      %s559 = ssub.s32 256, 256
      %560 = vsyncadd [#allocation3], %s559
      %s561 = sshll.u32 [#allocation2], 4
      %s562 = int_to_ptr.vmem [resolvable:$true] %s561
      %567 = dma.vmem_to_hbm [thread:$0]  %s562, 256, %s2, [#allocation3], 128, 128, 8
    $region13: #{tpu_custom_call.1} parent=1 // pred_fallthru
      _
    // Predicated region
    $region14: #{tpu_custom_call.1} parent=1 // pred_check
      _
    $region15: #{tpu_custom_call.1} parent=1 // pred_check_branch
      %569 = sbr.rel (0) target = $region17
    $region16: #{tpu_custom_call.1} parent=1 // pred_region
      %570 = dma.done [#allocation3], 256
    $region17: #{tpu_custom_call.1} parent=1 // pred_fallthru
      _
    %571 = vsyncpa [#allocation3], 1

</llo_original>
